<compile_context>
chip_gen: v7x
topology: tpu7x:2x2x1
jax: 0.10.0
libtpu: 0.0.40
codegen_flags: <defaults>
</compile_context>

<pallas_src>
import jax
import jax.numpy as jnp
import numpy as np
from jax import lax
from jax.experimental import pallas as pl
from jax.experimental.pallas import tpu as pltpu

EPS = 1e-8


def _ceil_to(v, m):
    return (v + m - 1) // m * m


# --------------------------------- kernel ---------------------------------

def resblock_up_kernel(x_ref, a1_ref, a2_ref, wc1_ref, wc2_ref, bias_ref, out_ref):
    # x_ref   : (Bt, Ci, L)      padded input channels
    # a1_ref  : (Bt, Ci, 2)      AdaIN1 [bias, scale] per channel
    # a2_ref  : (Bt, Co, 2)      AdaIN2 [bias, scale] per channel
    # wc1_ref : (2*Co, 3*Ci)     stacked even/odd conv1 weights (upsample folded)
    # wc2_ref : (2*Co, 4*Co+Ci)  stacked even/odd conv2 weights + fused skip 1x1
    # bias_ref: (2*Co, 2)        col0 = conv1 bias stacked, col1 = conv2+skip bias stacked
    # out_ref : (Bt, 2*Co, L)    even phase rows [0:Co), odd phase rows [Co:2Co)
    Bt, Ci, L = x_ref.shape
    Co = out_ref.shape[1] // 2

    # Weights / biases shared across the batch block — load once.
    wc1 = wc1_ref[...]
    wc2 = wc2_ref[...]
    b1s = bias_ref[:, 0:1]
    b2s = bias_ref[:, 1:2]

    # Hoisted lane masks (JAX does not CSE broadcast_in_dim; build once, reuse).
    lane = lax.broadcasted_iota(jnp.int32, (1, L), 1)
    first_lane = lane == 0
    last_lane = lane == L - 1

    def shift_right(v):   # y[:, j] = v[:, j-1], zero at j=0   (XLU roll + select)
        return jnp.where(first_lane, 0.0, pltpu.roll(v, shift=1, axis=1))

    def shift_left(v):    # y[:, j] = v[:, j+1], zero at j=L-1
        return jnp.where(last_lane, 0.0, pltpu.roll(v, shift=L - 1, axis=1))

    def body(bb, carry):
        x = x_ref[bb]                                   # (Ci, L)
        a1 = a1_ref[bb]
        yb1, ys1 = a1[:, 0:1], a1[:, 1:2]
        a2 = a2_ref[bb]
        yb2, ys2 = a2[:, 0:1], a2[:, 1:2]

        # ---- AdaIN1 + ReLU on the length-L signal -----------------------------
        mean1 = jnp.mean(x, axis=-1, keepdims=True)
        xc = x - mean1
        var1 = jnp.sum(xc * xc, axis=-1, keepdims=True) / (L - 1)   # torch.std: unbiased
        std1 = jnp.sqrt(var1) + EPS
        h1 = jnp.maximum((ys1 / std1) * xc + yb1, 0.0)               # (Ci, L)

        # ---- conv1 (k=3, pad=1) with nearest-x2 upsample folded in ------------
        # even 2j  : W0 @ h1[j-1] + (W1+W2) @ h1[j]
        # odd  2j+1: (W0+W1) @ h1[j] + W2 @ h1[j+1]
        # Both phases in ONE stacked-M matmul against a shared RHS.
        rhs1 = jnp.concatenate([shift_right(h1), h1, shift_left(h1)], axis=0)
        h2 = jnp.dot(wc1, rhs1, preferred_element_type=jnp.float32) + b1s   # (2Co, L)
        h2e = h2[:Co]
        h2o = h2[Co:]

        # ---- AdaIN2: stats pooled over the full length-2L interleaved signal --
        n2 = 2 * L
        mean2 = (jnp.sum(h2e, axis=-1, keepdims=True)
                 + jnp.sum(h2o, axis=-1, keepdims=True)) / n2
        ce = h2e - mean2
        co = h2o - mean2
        var2 = (jnp.sum(ce * ce, axis=-1, keepdims=True)
                + jnp.sum(co * co, axis=-1, keepdims=True)) / (n2 - 1)
        sc2 = ys2 / (jnp.sqrt(var2) + EPS)
        h3e = sc2 * ce + yb2              # (relu2 exists in the module but is unused)
        h3o = sc2 * co + yb2

        # ---- conv2 (k=3, pad=1) on the interleaved signal + fused 1x1 skip ----
        # even 2j  : V0 @ h3o[j-1] + V1 @ h3e[j] + V2 @ h3o[j] + Wsk @ x[j]
        # odd  2j+1: V0 @ h3e[j]   + V1 @ h3o[j] + V2 @ h3e[j+1] + Wsk @ x[j]
        rhs2 = jnp.concatenate(
            [shift_right(h3o), h3e, h3o, shift_left(h3e), x], axis=0)
        out_ref[bb] = (jnp.dot(wc2, rhs2, preferred_element_type=jnp.float32)
                       + b2s).astype(out_ref.dtype)
        return carry

    lax.fori_loop(0, Bt, body, 0, unroll=True)


# -------------------------------- wrapper ---------------------------------

def resblock_up(x, c, params, scale_factor=2, batch_block=None):
    """x: (B, in_ch, L) f32, c: (B, c_in_ch) f32 -> (out, c), out: (B, out_ch, 2L)."""
    assert scale_factor == 2, "fused kernel specializes to nearest x2 upsampling"
    # TODO(synk): nn.Upsample with arbitrary size / scale_factor != 2 is not handled
    # by this phase-decomposed kernel.
    B, in_ch, L = x.shape
    assert L >= 2, "unbiased variance needs L >= 2"
    out_ch = params["conv1_w"].shape[0]
    f32 = jnp.float32
    x = x.astype(f32)
    c = c.astype(f32)

    # Channel padding to sublane multiples so all in-kernel concats/slices are
    # tile-aligned.  Padded channels carry zero weights/affine params -> stay 0.
    Ci = _ceil_to(in_ch, 8)
    Co = _ceil_to(out_ch, 8)

    # Batch blocking: Bt samples per grid step, keeping a 2-way parallel axis
    # for megacore when B > 1 while amortizing per-step overhead.
    if batch_block is None:
        batch_block = max(1, -(-B // 2))
    Bt = max(1, min(batch_block, B))
    n_steps = -(-B // Bt)
    Bp = n_steps * Bt

    # AdaIN affine params hoisted out of the kernel (one XLA matmul per layer).
    yb1 = c @ params["n1_bias_w"].T + params["n1_bias_b"]
    ys1 = c @ params["n1_scale_w"].T + params["n1_scale_b"]
    yb2 = c @ params["n2_bias_w"].T + params["n2_bias_b"]
    ys2 = c @ params["n2_scale_w"].T + params["n2_scale_b"]

    def pad_bc(a, Cp):  # (B, ch) -> (Bp, Cp), zero-padded
        return jnp.pad(a, ((0, Bp - B), (0, Cp - a.shape[1])))

    ada1 = jnp.stack([pad_bc(yb1, Ci), pad_bc(ys1, Ci)], axis=-1).astype(f32)  # (Bp, Ci, 2)
    ada2 = jnp.stack([pad_bc(yb2, Co), pad_bc(ys2, Co)], axis=-1).astype(f32)  # (Bp, Co, 2)
    x_p = jnp.pad(x, ((0, Bp - B), (0, Ci - in_ch), (0, 0)))                   # (Bp, Ci, L)

    # Stacked-M conv1 weights (even rows [0:Co), odd rows [Co:2Co)),
    # nearest-x2 upsample folded into the per-phase taps, K padded to 3*Ci.
    w1 = params["conv1_w"].astype(f32)
    W0, W1, W2 = w1[:, :, 0], w1[:, :, 1], w1[:, :, 2]
    wc1 = jnp.zeros((2 * Co, 3 * Ci), f32)
    wc1 = wc1.at[:out_ch, :in_ch].set(W0)
    wc1 = wc1.at[:out_ch, Ci:Ci + in_ch].set(W1 + W2)
    wc1 = wc1.at[Co:Co + out_ch, Ci:Ci + in_ch].set(W0 + W1)
    wc1 = wc1.at[Co:Co + out_ch, 2 * Ci:2 * Ci + in_ch].set(W2)

    # Stacked-M conv2 weights with the 1x1 skip conv fused as an extra K block.
    w2 = params["conv2_w"].astype(f32)
    V0, V1, V2 = w2[:, :, 0], w2[:, :, 1], w2[:, :, 2]
    wsk = params["convs_w"][:, :, 0].astype(f32)
    wc2 = jnp.zeros((2 * Co, 4 * Co + Ci), f32)
    wc2 = wc2.at[:out_ch, :out_ch].set(V0)                      # even: V0 @ sr(h3o)
    wc2 = wc2.at[:out_ch, Co:Co + out_ch].set(V1)                # even: V1 @ h3e
    wc2 = wc2.at[:out_ch, 2 * Co:2 * Co + out_ch].set(V2)        # even: V2 @ h3o
    wc2 = wc2.at[Co:Co + out_ch, Co:Co + out_ch].set(V0)         # odd : V0 @ h3e
    wc2 = wc2.at[Co:Co + out_ch, 2 * Co:2 * Co + out_ch].set(V1) # odd : V1 @ h3o
    wc2 = wc2.at[Co:Co + out_ch, 3 * Co:3 * Co + out_ch].set(V2) # odd : V2 @ sl(h3e)
    wc2 = wc2.at[:out_ch, 4 * Co:4 * Co + in_ch].set(wsk)        # skip (both phases)
    wc2 = wc2.at[Co:Co + out_ch, 4 * Co:4 * Co + in_ch].set(wsk)

    b1 = params["conv1_b"].astype(f32)
    b2sk = (params["conv2_b"] + params["convs_b"]).astype(f32)   # conv2 + skip biases fused
    biases = jnp.zeros((2 * Co, 2), f32)
    biases = biases.at[:out_ch, 0].set(b1)
    biases = biases.at[Co:Co + out_ch, 0].set(b1)
    biases = biases.at[:out_ch, 1].set(b2sk)
    biases = biases.at[Co:Co + out_ch, 1].set(b2sk)

    def full_spec(a):
        nd = a.ndim
        return pl.BlockSpec(a.shape, lambda b, nd=nd: (0,) * nd)

    out_stacked = pl.pallas_call(
        resblock_up_kernel,
        out_shape=jax.ShapeDtypeStruct((Bp, 2 * Co, L), f32),
        grid=(n_steps,),
        in_specs=[
            pl.BlockSpec((Bt, Ci, L), lambda b: (b, 0, 0)),       # x
            pl.BlockSpec((Bt, Ci, 2), lambda b: (b, 0, 0)),       # ada1
            pl.BlockSpec((Bt, Co, 2), lambda b: (b, 0, 0)),       # ada2
            full_spec(wc1), full_spec(wc2), full_spec(biases),
        ],
        out_specs=pl.BlockSpec((Bt, 2 * Co, L), lambda b: (b, 0, 0)),
        compiler_params=pltpu.CompilerParams(dimension_semantics=("parallel",)),
    )(x_p, ada1, ada2, wc1, wc2, biases)

    # Wrapper-side layout plumbing: drop channel/batch padding, interleave phases.
    out_e = out_stacked[:B, :out_ch, :]
    out_o = out_stacked[:B, Co:Co + out_ch, :]
    out = jnp.stack([out_e, out_o], axis=-1).reshape(B, out_ch, 2 * L)
    return out, c


# ----------------------- deterministic parameter init ----------------------

def init_params(key, in_ch, out_ch, c_in_ch):
    ks = jax.random.split(key, 7)
    f32 = jnp.float32

    def lin(k, o, i):
        kw, kb = jax.random.split(k)
        s = 1.0 / np.sqrt(i)
        return (jax.random.uniform(kw, (o, i), f32, -s, s),
                jax.random.uniform(kb, (o,), f32, -s, s))

    def conv(k, o, i, ksz):
        kw, kb = jax.random.split(k)
        s = 1.0 / np.sqrt(i * ksz)
        return (jax.random.uniform(kw, (o, i, ksz), f32, -s, s),
                jax.random.uniform(kb, (o,), f32, -s, s))

    p = {}
    p["n1_bias_w"], p["n1_bias_b"] = lin(ks[0], in_ch, c_in_ch)
    p["n1_scale_w"], p["n1_scale_b"] = lin(ks[1], in_ch, c_in_ch)
    p["conv1_w"], p["conv1_b"] = conv(ks[2], out_ch, in_ch, 3)
    p["n2_bias_w"], p["n2_bias_b"] = lin(ks[3], out_ch, c_in_ch)
    p["n2_scale_w"], p["n2_scale_b"] = lin(ks[4], out_ch, c_in_ch)
    p["conv2_w"], p["conv2_b"] = conv(ks[5], out_ch, out_ch, 3)
    p["convs_w"], p["convs_b"] = conv(ks[6], out_ch, in_ch, 1)
    return p


# ---------------------------- pure-JAX reference ---------------------------

def reference(x, c, p, scale_factor=2):
    def adain(h, w_b, b_b, w_s, b_s):
        mean = jnp.mean(h, axis=-1, keepdims=True)
        std = jnp.std(h, axis=-1, keepdims=True, ddof=1) + EPS
        y_b = (c @ w_b.T + b_b)[:, :, None]
        y_s = (c @ w_s.T + b_s)[:, :, None]
        return y_s * (h - mean) / std + y_b

    def conv1d(h, w, b, pad):
        out = lax.conv_general_dilated(h, w, window_strides=(1,),
                                       padding=[(pad, pad)],
                                       dimension_numbers=("NCH", "OIH", "NCH"))
        return out + b[None, :, None]

    up = lambda h: jnp.repeat(h, scale_factor, axis=-1)

    h = adain(x, p["n1_bias_w"], p["n1_bias_b"], p["n1_scale_w"], p["n1_scale_b"])
    h = jax.nn.relu(h)
    h = up(h)
    h = conv1d(h, p["conv1_w"], p["conv1_b"], 1)
    h = adain(h, p["n2_bias_w"], p["n2_bias_b"], p["n2_scale_w"], p["n2_scale_b"])
    h = conv1d(h, p["conv2_w"], p["conv2_b"], 1)
    skip = conv1d(up(x), p["convs_w"], p["convs_b"], 0)
    return skip + h


# ---------------------------------- main -----------------------------------

if __name__ == "__main__":
    B, in_ch, out_ch, c_in_ch, L, sf = 2, 4, 6, 5, 128, 2
    key = jax.random.PRNGKey(0)
    kx, kc, kp = jax.random.split(key, 3)
    x = jax.random.normal(kx, (B, in_ch, L), jnp.float32)
    c = jax.random.normal(kc, (B, c_in_ch), jnp.float32)
    params = init_params(kp, in_ch, out_ch, c_in_ch)

    out, c_out = resblock_up(x, c, params, scale_factor=sf)
    out = jax.block_until_ready(out)

    ref = reference(x, c, params, scale_factor=sf)
    if not np.allclose(np.asarray(out), np.asarray(ref), atol=1e-3, rtol=1e-3):
        raise AssertionError("Pallas kernel output does not match reference")

    print("KERNEL_OK")
</pallas_src>

<mosaic_0001>
module attributes {stable_mosaic.version = 11 : i64} {
  func.func @resblock_up_kernel(%arg0: i32, %arg1: memref<1x8x128xf32, #tpu.memory_space<vmem>>, %arg2: memref<1x8x2xf32, #tpu.memory_space<vmem>>, %arg3: memref<1x8x2xf32, #tpu.memory_space<vmem>>, %arg4: memref<16x24xf32, #tpu.memory_space<vmem>>, %arg5: memref<16x40xf32, #tpu.memory_space<vmem>>, %arg6: memref<16x2xf32, #tpu.memory_space<vmem>>, %arg7: memref<1x16x128xf32, #tpu.memory_space<vmem>>) attributes {dimension_semantics = [#tpu.dimension_semantics<parallel>], iteration_bounds = array<i64: 2>, scalar_prefetch = 0 : i64, scratch_operands = 0 : i64, tpu.core_type = #tpu.core_type<tc>, window_params = [{transform_indices = @transform_0, window_bounds = array<i64: 1, 8, 128>}, {transform_indices = @transform_1, window_bounds = array<i64: 1, 8, 2>}, {transform_indices = @transform_2, window_bounds = array<i64: 1, 8, 2>}, {pipeline_mode = #tpu.pipeline_mode<synchronous>, transform_indices = @transform_3, window_bounds = array<i64: 16, 24>}, {pipeline_mode = #tpu.pipeline_mode<synchronous>, transform_indices = @transform_4, window_bounds = array<i64: 16, 40>}, {pipeline_mode = #tpu.pipeline_mode<synchronous>, transform_indices = @transform_5, window_bounds = array<i64: 16, 2>}, {transform_indices = @transform_6, window_bounds = array<i64: 1, 16, 128>}]} {
    %c0 = arith.constant 0 : index
    %c0_0 = arith.constant 0 : index
    %0 = vector.load %arg4[%c0, %c0_0] : memref<16x24xf32, #tpu.memory_space<vmem>>, vector<16x24xf32>
    %c0_1 = arith.constant 0 : index
    %c0_2 = arith.constant 0 : index
    %1 = vector.load %arg5[%c0_1, %c0_2] : memref<16x40xf32, #tpu.memory_space<vmem>>, vector<16x40xf32>
    %c0_3 = arith.constant 0 : index
    %c0_4 = arith.constant 0 : index
    %2 = vector.load %arg6[%c0_3, %c0_4] : memref<16x2xf32, #tpu.memory_space<vmem>>, vector<16x1xf32>
    %c0_5 = arith.constant 0 : index
    %c1 = arith.constant 1 : index
    %3 = vector.load %arg6[%c0_5, %c1] : memref<16x2xf32, #tpu.memory_space<vmem>>, vector<16x1xf32>
    %4 = tpu.iota {dimensions = array<i32: 1>} : vector<1x128xi32>
    %c0_i32 = arith.constant 0 : i32
    %5 = vector.broadcast %c0_i32 : i32 to vector<1x128xi32>
    %6 = arith.cmpi eq, %4, %5 : vector<1x128xi32>
    %c127_i32 = arith.constant 127 : i32
    %7 = vector.broadcast %c127_i32 : i32 to vector<1x128xi32>
    %8 = arith.cmpi eq, %4, %7 : vector<1x128xi32>
    %c0_i32_6 = arith.constant 0 : i32
    %9 = arith.index_cast %c0_i32_6 : i32 to index
    %c0_7 = arith.constant 0 : index
    %c0_8 = arith.constant 0 : index
    %10 = vector.load %arg1[%9, %c0_7, %c0_8] : memref<1x8x128xf32, #tpu.memory_space<vmem>>, vector<1x8x128xf32>
    %11 = vector.shape_cast %10 : vector<1x8x128xf32> to vector<8x128xf32>
    %12 = arith.index_cast %c0_i32_6 : i32 to index
    %c0_9 = arith.constant 0 : index
    %c0_10 = arith.constant 0 : index
    %13 = vector.load %arg2[%12, %c0_9, %c0_10] : memref<1x8x2xf32, #tpu.memory_space<vmem>>, vector<1x8x2xf32>
    %14 = vector.shape_cast %13 : vector<1x8x2xf32> to vector<8x2xf32>
    %15 = vector.extract_strided_slice %14 {offsets = [0, 0], sizes = [8, 1], strides = [1, 1]} : vector<8x2xf32> to vector<8x1xf32>
    %16 = vector.extract_strided_slice %14 {offsets = [0, 1], sizes = [8, 1], strides = [1, 1]} : vector<8x2xf32> to vector<8x1xf32>
    %17 = arith.index_cast %c0_i32_6 : i32 to index
    %c0_11 = arith.constant 0 : index
    %c0_12 = arith.constant 0 : index
    %18 = vector.load %arg3[%17, %c0_11, %c0_12] : memref<1x8x2xf32, #tpu.memory_space<vmem>>, vector<1x8x2xf32>
    %19 = vector.shape_cast %18 : vector<1x8x2xf32> to vector<8x2xf32>
    %20 = vector.extract_strided_slice %19 {offsets = [0, 0], sizes = [8, 1], strides = [1, 1]} : vector<8x2xf32> to vector<8x1xf32>
    %21 = vector.extract_strided_slice %19 {offsets = [0, 1], sizes = [8, 1], strides = [1, 1]} : vector<8x2xf32> to vector<8x1xf32>
    %cst = arith.constant dense<0.000000e+00> : vector<8xf32>
    %22 = vector.multi_reduction <add>, %11, %cst [1] : vector<8x128xf32> to vector<8xf32>
    %23 = vector.shape_cast %22 : vector<8xf32> to vector<8x1xf32>
    %cst_13 = arith.constant 1.280000e+02 : f32
    %24 = vector.broadcast %cst_13 : f32 to vector<8x1xf32>
    %25 = arith.divf %23, %24 : vector<8x1xf32>
    %26 = vector.broadcast %25 : vector<8x1xf32> to vector<8x128xf32>
    %27 = arith.subf %11, %26 : vector<8x128xf32>
    %28 = arith.mulf %27, %27 : vector<8x128xf32>
    %cst_14 = arith.constant dense<0.000000e+00> : vector<8xf32>
    %29 = vector.multi_reduction <add>, %28, %cst_14 [1] : vector<8x128xf32> to vector<8xf32>
    %30 = vector.shape_cast %29 : vector<8xf32> to vector<8x1xf32>
    %cst_15 = arith.constant 1.270000e+02 : f32
    %31 = vector.broadcast %cst_15 : f32 to vector<8x1xf32>
    %32 = arith.divf %30, %31 : vector<8x1xf32>
    %33 = math.sqrt %32 : vector<8x1xf32>
    %cst_16 = arith.constant 9.99999993E-9 : f32
    %34 = vector.broadcast %cst_16 : f32 to vector<8x1xf32>
    %35 = arith.addf %33, %34 : vector<8x1xf32>
    %36 = arith.divf %16, %35 : vector<8x1xf32>
    %37 = vector.broadcast %36 : vector<8x1xf32> to vector<8x128xf32>
    %38 = arith.mulf %37, %27 : vector<8x128xf32>
    %39 = vector.broadcast %15 : vector<8x1xf32> to vector<8x128xf32>
    %40 = arith.addf %38, %39 : vector<8x128xf32>
    %cst_17 = arith.constant 0.000000e+00 : f32
    %41 = vector.broadcast %cst_17 : f32 to vector<8x128xf32>
    %42 = arith.maximumf %40, %41 : vector<8x128xf32>
    %c1_i32 = arith.constant 1 : i32
    %43 = tpu.dynamic_rotate %42 by %c1_i32 dim 1 : vector<8x128xf32>, i32 -> vector<8x128xf32>
    %cst_18 = arith.constant 0.000000e+00 : f32
    %44 = vector.shape_cast %6 : vector<1x128xi1> to vector<1x128xi1>
    %45 = vector.broadcast %44 : vector<1x128xi1> to vector<8x128xi1>
    %46 = vector.broadcast %cst_18 : f32 to vector<8x128xf32>
    %47 = arith.select %45, %46, %43 : vector<8x128xi1>, vector<8x128xf32>
    %c127_i32_19 = arith.constant 127 : i32
    %48 = tpu.dynamic_rotate %42 by %c127_i32_19 dim 1 : vector<8x128xf32>, i32 -> vector<8x128xf32>
    %cst_20 = arith.constant 0.000000e+00 : f32
    %49 = vector.shape_cast %8 : vector<1x128xi1> to vector<1x128xi1>
    %50 = vector.broadcast %49 : vector<1x128xi1> to vector<8x128xi1>
    %51 = vector.broadcast %cst_20 : f32 to vector<8x128xf32>
    %52 = arith.select %50, %51, %48 : vector<8x128xi1>, vector<8x128xf32>
    %53 = tpu.concatenate %47, %42, %52 in 0 : vector<8x128xf32>, vector<8x128xf32>, vector<8x128xf32> -> vector<24x128xf32>
    %cst_21 = arith.constant dense<0.000000e+00> : vector<16x128xf32>
    %54 = tpu.matmul %0, %53, %cst_21 {dimension_numbers = #tpu.dot_dimension_numbers<[1], [0], [0], [1], [0, 0, 1, 1], [], []>} : vector<16x24xf32>, vector<24x128xf32>, vector<16x128xf32> -> vector<16x128xf32>
    %55 = vector.broadcast %2 : vector<16x1xf32> to vector<16x128xf32>
    %56 = arith.addf %54, %55 : vector<16x128xf32>
    %57 = vector.extract_strided_slice %56 {offsets = [0, 0], sizes = [8, 128], strides = [1, 1]} : vector<16x128xf32> to vector<8x128xf32>
    %58 = vector.extract_strided_slice %56 {offsets = [8, 0], sizes = [8, 128], strides = [1, 1]} : vector<16x128xf32> to vector<8x128xf32>
    %cst_22 = arith.constant dense<0.000000e+00> : vector<8xf32>
    %59 = vector.multi_reduction <add>, %57, %cst_22 [1] : vector<8x128xf32> to vector<8xf32>
    %60 = vector.shape_cast %59 : vector<8xf32> to vector<8x1xf32>
    %cst_23 = arith.constant dense<0.000000e+00> : vector<8xf32>
    %61 = vector.multi_reduction <add>, %58, %cst_23 [1] : vector<8x128xf32> to vector<8xf32>
    %62 = vector.shape_cast %61 : vector<8xf32> to vector<8x1xf32>
    %63 = arith.addf %60, %62 : vector<8x1xf32>
    %cst_24 = arith.constant 2.560000e+02 : f32
    %64 = vector.broadcast %cst_24 : f32 to vector<8x1xf32>
    %65 = arith.divf %63, %64 : vector<8x1xf32>
    %66 = vector.broadcast %65 : vector<8x1xf32> to vector<8x128xf32>
    %67 = arith.subf %57, %66 : vector<8x128xf32>
    %68 = vector.broadcast %65 : vector<8x1xf32> to vector<8x128xf32>
    %69 = arith.subf %58, %68 : vector<8x128xf32>
    %70 = arith.mulf %67, %67 : vector<8x128xf32>
    %cst_25 = arith.constant dense<0.000000e+00> : vector<8xf32>
    %71 = vector.multi_reduction <add>, %70, %cst_25 [1] : vector<8x128xf32> to vector<8xf32>
    %72 = vector.shape_cast %71 : vector<8xf32> to vector<8x1xf32>
    %73 = arith.mulf %69, %69 : vector<8x128xf32>
    %cst_26 = arith.constant dense<0.000000e+00> : vector<8xf32>
    %74 = vector.multi_reduction <add>, %73, %cst_26 [1] : vector<8x128xf32> to vector<8xf32>
    %75 = vector.shape_cast %74 : vector<8xf32> to vector<8x1xf32>
    %76 = arith.addf %72, %75 : vector<8x1xf32>
    %cst_27 = arith.constant 2.550000e+02 : f32
    %77 = vector.broadcast %cst_27 : f32 to vector<8x1xf32>
    %78 = arith.divf %76, %77 : vector<8x1xf32>
    %79 = math.sqrt %78 : vector<8x1xf32>
    %cst_28 = arith.constant 9.99999993E-9 : f32
    %80 = vector.broadcast %cst_28 : f32 to vector<8x1xf32>
    %81 = arith.addf %79, %80 : vector<8x1xf32>
    %82 = arith.divf %21, %81 : vector<8x1xf32>
    %83 = vector.broadcast %82 : vector<8x1xf32> to vector<8x128xf32>
    %84 = arith.mulf %83, %67 : vector<8x128xf32>
    %85 = vector.broadcast %20 : vector<8x1xf32> to vector<8x128xf32>
    %86 = arith.addf %84, %85 : vector<8x128xf32>
    %87 = vector.broadcast %82 : vector<8x1xf32> to vector<8x128xf32>
    %88 = arith.mulf %87, %69 : vector<8x128xf32>
    %89 = vector.broadcast %20 : vector<8x1xf32> to vector<8x128xf32>
    %90 = arith.addf %88, %89 : vector<8x128xf32>
    %c1_i32_29 = arith.constant 1 : i32
    %91 = tpu.dynamic_rotate %90 by %c1_i32_29 dim 1 : vector<8x128xf32>, i32 -> vector<8x128xf32>
    %cst_30 = arith.constant 0.000000e+00 : f32
    %92 = vector.shape_cast %6 : vector<1x128xi1> to vector<1x128xi1>
    %93 = vector.broadcast %92 : vector<1x128xi1> to vector<8x128xi1>
    %94 = vector.broadcast %cst_30 : f32 to vector<8x128xf32>
    %95 = arith.select %93, %94, %91 : vector<8x128xi1>, vector<8x128xf32>
    %c127_i32_31 = arith.constant 127 : i32
    %96 = tpu.dynamic_rotate %86 by %c127_i32_31 dim 1 : vector<8x128xf32>, i32 -> vector<8x128xf32>
    %cst_32 = arith.constant 0.000000e+00 : f32
    %97 = vector.shape_cast %8 : vector<1x128xi1> to vector<1x128xi1>
    %98 = vector.broadcast %97 : vector<1x128xi1> to vector<8x128xi1>
    %99 = vector.broadcast %cst_32 : f32 to vector<8x128xf32>
    %100 = arith.select %98, %99, %96 : vector<8x128xi1>, vector<8x128xf32>
    %101 = tpu.concatenate %95, %86, %90, %100, %11 in 0 : vector<8x128xf32>, vector<8x128xf32>, vector<8x128xf32>, vector<8x128xf32>, vector<8x128xf32> -> vector<40x128xf32>
    %cst_33 = arith.constant dense<0.000000e+00> : vector<16x128xf32>
    %102 = tpu.matmul %1, %101, %cst_33 {dimension_numbers = #tpu.dot_dimension_numbers<[1], [0], [0], [1], [0, 0, 1, 1], [], []>} : vector<16x40xf32>, vector<40x128xf32>, vector<16x128xf32> -> vector<16x128xf32>
    %103 = vector.broadcast %3 : vector<16x1xf32> to vector<16x128xf32>
    %104 = arith.addf %102, %103 : vector<16x128xf32>
    %105 = arith.index_cast %c0_i32_6 : i32 to index
    %c0_34 = arith.constant 0 : index
    %c0_35 = arith.constant 0 : index
    %106 = vector.load %arg7[%105, %c0_34, %c0_35] : memref<1x16x128xf32, #tpu.memory_space<vmem>>, vector<1x16x128xf32>
    %107 = vector.shape_cast %106 : vector<1x16x128xf32> to vector<16x128xf32>
    %108 = vector.shape_cast %104 : vector<16x128xf32> to vector<1x16x128xf32>
    tpu.vector_store %arg7[%105, %c0_34, %c0_35], %108 {strides = array<i32>} : memref<1x16x128xf32, #tpu.memory_space<vmem>>, vector<1x16x128xf32>,
    %c1_i32_36 = arith.constant 1 : i32
    return
  }
  func.func @transform_0(%arg0: i32) -> (i32, i32, i32) {
    %c0_i32 = arith.constant 0 : i32
    %c0_i32_0 = arith.constant 0 : i32
    %c0_i32_1 = arith.constant 0 : i32
    return %arg0, %c0_i32, %c0_i32_0 : i32, i32, i32
  }
  func.func @transform_1(%arg0: i32) -> (i32, i32, i32) {
    %c0_i32 = arith.constant 0 : i32
    %c0_i32_0 = arith.constant 0 : i32
    %c0_i32_1 = arith.constant 0 : i32
    return %arg0, %c0_i32, %c0_i32_0 : i32, i32, i32
  }
  func.func @transform_2(%arg0: i32) -> (i32, i32, i32) {
    %c0_i32 = arith.constant 0 : i32
    %c0_i32_0 = arith.constant 0 : i32
    %c0_i32_1 = arith.constant 0 : i32
    return %arg0, %c0_i32, %c0_i32_0 : i32, i32, i32
  }
  func.func @transform_3(%arg0: i32) -> (i32, i32) {
    %c0_i32 = arith.constant 0 : i32
    %c0_i32_0 = arith.constant 0 : i32
    %c0_i32_1 = arith.constant 0 : i32
    return %c0_i32, %c0_i32_0 : i32, i32
  }
  func.func @transform_4(%arg0: i32) -> (i32, i32) {
    %c0_i32 = arith.constant 0 : i32
    %c0_i32_0 = arith.constant 0 : i32
    %c0_i32_1 = arith.constant 0 : i32
    return %c0_i32, %c0_i32_0 : i32, i32
  }
  func.func @transform_5(%arg0: i32) -> (i32, i32) {
    %c0_i32 = arith.constant 0 : i32
    %c0_i32_0 = arith.constant 0 : i32
    %c0_i32_1 = arith.constant 0 : i32
    return %c0_i32, %c0_i32_0 : i32, i32
  }
  func.func @transform_6(%arg0: i32) -> (i32, i32, i32) {
    %c0_i32 = arith.constant 0 : i32
    %c0_i32_0 = arith.constant 0 : i32
    %c0_i32_1 = arith.constant 0 : i32
    return %arg0, %c0_i32, %c0_i32_0 : i32, i32, i32
  }
}

</mosaic_0001>

<llo_original>
// kernel: tpu_custom_call.1
$region0: #{tpu_custom_call.1}
  #allocation0 [shape = 'u32[]', space=smem, size = 0x4, offset = 0x4, fixed_abs, tag = 'smem constant byte address 0x4 - core index']
  #allocation1 [shape = 'u32[144,128]{1,0:T(1,128)}', space=vmem, size = 0x12000, scoped, tag = 'internal scratch']
  %s0 = inlined_call_operand.vmem [shape: f32[2,8,128], index: 0, kind: input, shape index: {}]
  %s1 = inlined_call_operand.vmem [shape: f32[2,8,2], index: 1, kind: input, shape index: {}]
  %s2 = inlined_call_operand.vmem [shape: f32[2,8,2], index: 2, kind: input, shape index: {}]
  %s3 = inlined_call_operand.vmem [shape: f32[16,24], index: 3, kind: input, shape index: {}]
  %s4 = inlined_call_operand.vmem [shape: f32[16,40], index: 4, kind: input, shape index: {}]
  %s5 = inlined_call_operand.vmem [shape: f32[16,2], index: 5, kind: input, shape index: {}]
  %s6 = inlined_call_operand.hbm [shape: f32[2,16,128], index: 6, kind: output, shape index: {}]
  %s7 = sld [smem:[#allocation0]]
  $region57: #{tpu_custom_call.1} parent=0
    _
  %s9 = ssub.s32 1, %s7
  %s10 = scalar_select 0, %s9, %s7
  $region1: #{tpu_custom_call.1} parent=0
    #allocation2 [shape = 'u8[16384]{0}', space=vmem, size = 0x4000, scoped, tag = 'output window, operand 0']
    #allocation3 [shape = 's32[2]{0}', space=sflag, size = 0x8, scoped, tag = 'scoped memory for tpu_custom_call.1']
    %11 = vsyncpa [#allocation3], 0
    %s12 = scalar_lea.sflag [#allocation3], 1
    %13 = vsyncpa %s12, 0
    loop: start=0, step=1, limit=4
    $region2: #{tpu_custom_call.1} parent=1 // loop_pre_header
      _
    $region3: #{tpu_custom_call.1} parent=1 // loop_header
      %s15 = sphi 0, %s19
      %p16 = scmp.ge.s32.totalorder %s15, 4
      %s25 = sphi 0, %s27
      %s28 = sphi 0, %s25
      %s29 = sphi 0, %s28
      %s45 = sphi 0, %s29
      %s51 = sphi 0, %s53
      %s54 = sphi 0, %s51
      %s55 = sphi 0, %s54
      %s71 = sphi 0, %s55
      %s77 = sphi 0, %s79
      %s80 = sphi 0, %s77
      %s81 = sphi 0, %s80
      %s97 = sphi 0, %s81
      %s101 = sphi 0, %s101
      %s103 = sphi 0, %s101
      %s104 = sphi 0, %s103
      %s118 = sphi 0, %s104
      %s122 = sphi 0, %s122
      %s124 = sphi 0, %s122
      %s125 = sphi 0, %s124
      %s139 = sphi 0, %s125
      %s143 = sphi 0, %s143
      %s145 = sphi 0, %s143
      %s146 = sphi 0, %s145
      %s160 = sphi 0, %s146
      %s166 = sphi 0, %s168
      %s169 = sphi 0, %s166
      %s170 = sphi 0, %s169
      %s186 = sphi 0, %s170
    $region4: #{tpu_custom_call.1} parent=1 // loop_header_branch
      %18 = sbr.rel (%p16) target = $region8
    $region5: #{tpu_custom_call.1} parent=1 // loop_body
      %s20 = ssub.s32 %s15, 1
      %s21 = ssub.s32 %s15, 2
      %s22 = sadd.s32 %s15, 1
      %s23 = ssub.s32 %s15, %s22
      %p24 = scmp.eq.s32.totalorder %s23, 0
      %s26 = sadd.s32 %s25, 1
      %s27 = scalar_select %p24, %s25, %s26
      %p30 = pneg %p24
      %p31 = scmp.eq.s32.totalorder %s15, 1
      %p32 = por %p30, %p31
      %p33 = scmp.ne.s32.totalorder %s25, %s28
      %p34 = scmp.eq.s32.totalorder %s15, 0
      %p35 = por %p33, %p34
      %p36 = scmp.ne.s32.totalorder %s25, %s28
      %p37 = scmp.eq.s32.totalorder %s20, 1
      %p38 = por %p36, %p37
      %p39 = scmp.ne.s32.totalorder %s28, %s29
      %p40 = scmp.eq.s32.totalorder %s20, 0
      %p41 = por %p39, %p40
      %p42 = scmp.ne.s32.totalorder %s28, %s29
      %p43 = scmp.eq.s32.totalorder %s21, 1
      %p44 = por %p42, %p43
      %p46 = scmp.ne.s32.totalorder %s29, %s45
      %p47 = scmp.eq.s32.totalorder %s21, 0
      %p48 = por %p46, %p47
      %s49 = ssub.s32 %s15, %s22
      %p50 = scmp.eq.s32.totalorder %s49, 0
      %s52 = sadd.s32 %s51, 1
      %s53 = scalar_select %p50, %s51, %s52
      %p56 = pneg %p50
      %p57 = scmp.eq.s32.totalorder %s15, 1
      %p58 = por %p56, %p57
      %p59 = scmp.ne.s32.totalorder %s51, %s54
      %p60 = scmp.eq.s32.totalorder %s15, 0
      %p61 = por %p59, %p60
      %p62 = scmp.ne.s32.totalorder %s51, %s54
      %p63 = scmp.eq.s32.totalorder %s20, 1
      %p64 = por %p62, %p63
      %p65 = scmp.ne.s32.totalorder %s54, %s55
      %p66 = scmp.eq.s32.totalorder %s20, 0
      %p67 = por %p65, %p66
      %p68 = scmp.ne.s32.totalorder %s54, %s55
      %p69 = scmp.eq.s32.totalorder %s21, 1
      %p70 = por %p68, %p69
      %p72 = scmp.ne.s32.totalorder %s55, %s71
      %p73 = scmp.eq.s32.totalorder %s21, 0
      %p74 = por %p72, %p73
      %s75 = ssub.s32 %s15, %s22
      %p76 = scmp.eq.s32.totalorder %s75, 0
      %s78 = sadd.s32 %s77, 1
      %s79 = scalar_select %p76, %s77, %s78
      %p82 = pneg %p76
      %p83 = scmp.eq.s32.totalorder %s15, 1
      %p84 = por %p82, %p83
      %p85 = scmp.ne.s32.totalorder %s77, %s80
      %p86 = scmp.eq.s32.totalorder %s15, 0
      %p87 = por %p85, %p86
      %p88 = scmp.ne.s32.totalorder %s77, %s80
      %p89 = scmp.eq.s32.totalorder %s20, 1
      %p90 = por %p88, %p89
      %p91 = scmp.ne.s32.totalorder %s80, %s81
      %p92 = scmp.eq.s32.totalorder %s20, 0
      %p93 = por %p91, %p92
      %p94 = scmp.ne.s32.totalorder %s80, %s81
      %p95 = scmp.eq.s32.totalorder %s21, 1
      %p96 = por %p94, %p95
      %p98 = scmp.ne.s32.totalorder %s81, %s97
      %p99 = scmp.eq.s32.totalorder %s21, 0
      %p100 = por %p98, %p99
      %s102 = sadd.s32 %s101, 1
      %p105 = scmp.eq.s32.totalorder %s15, 1
      %p106 = scmp.ne.s32.totalorder %s101, %s103
      %p107 = scmp.eq.s32.totalorder %s15, 0
      %p108 = por %p106, %p107
      %p109 = scmp.ne.s32.totalorder %s101, %s103
      %p110 = scmp.eq.s32.totalorder %s20, 1
      %p111 = por %p109, %p110
      %p112 = scmp.ne.s32.totalorder %s103, %s104
      %p113 = scmp.eq.s32.totalorder %s20, 0
      %p114 = por %p112, %p113
      %p115 = scmp.ne.s32.totalorder %s103, %s104
      %p116 = scmp.eq.s32.totalorder %s21, 1
      %p117 = por %p115, %p116
      %p119 = scmp.ne.s32.totalorder %s104, %s118
      %p120 = scmp.eq.s32.totalorder %s21, 0
      %p121 = por %p119, %p120
      %s123 = sadd.s32 %s122, 1
      %p126 = scmp.eq.s32.totalorder %s15, 1
      %p127 = scmp.ne.s32.totalorder %s122, %s124
      %p128 = scmp.eq.s32.totalorder %s15, 0
      %p129 = por %p127, %p128
      %p130 = scmp.ne.s32.totalorder %s122, %s124
      %p131 = scmp.eq.s32.totalorder %s20, 1
      %p132 = por %p130, %p131
      %p133 = scmp.ne.s32.totalorder %s124, %s125
      %p134 = scmp.eq.s32.totalorder %s20, 0
      %p135 = por %p133, %p134
      %p136 = scmp.ne.s32.totalorder %s124, %s125
      %p137 = scmp.eq.s32.totalorder %s21, 1
      %p138 = por %p136, %p137
      %p140 = scmp.ne.s32.totalorder %s125, %s139
      %p141 = scmp.eq.s32.totalorder %s21, 0
      %p142 = por %p140, %p141
      %s144 = sadd.s32 %s143, 1
      %p147 = scmp.eq.s32.totalorder %s15, 1
      %p148 = scmp.ne.s32.totalorder %s143, %s145
      %p149 = scmp.eq.s32.totalorder %s15, 0
      %p150 = por %p148, %p149
      %p151 = scmp.ne.s32.totalorder %s143, %s145
      %p152 = scmp.eq.s32.totalorder %s20, 1
      %p153 = por %p151, %p152
      %p154 = scmp.ne.s32.totalorder %s145, %s146
      %p155 = scmp.eq.s32.totalorder %s20, 0
      %p156 = por %p154, %p155
      %p157 = scmp.ne.s32.totalorder %s145, %s146
      %p158 = scmp.eq.s32.totalorder %s21, 1
      %p159 = por %p157, %p158
      %p161 = scmp.ne.s32.totalorder %s146, %s160
      %p162 = scmp.eq.s32.totalorder %s21, 0
      %p163 = por %p161, %p162
      %s164 = ssub.s32 %s15, %s22
      %p165 = scmp.eq.s32.totalorder %s164, 0
      %s167 = sadd.s32 %s166, 1
      %s168 = scalar_select %p165, %s166, %s167
      %p171 = pneg %p165
      %p172 = scmp.eq.s32.totalorder %s15, 1
      %p173 = por %p171, %p172
      %p174 = scmp.ne.s32.totalorder %s166, %s169
      %p175 = scmp.eq.s32.totalorder %s15, 0
      %p176 = por %p174, %p175
      %p177 = scmp.ne.s32.totalorder %s166, %s169
      %p178 = scmp.eq.s32.totalorder %s20, 1
      %p179 = por %p177, %p178
      %p180 = scmp.ne.s32.totalorder %s169, %s170
      %p181 = scmp.eq.s32.totalorder %s20, 0
      %p182 = por %p180, %p181
      %p183 = scmp.ne.s32.totalorder %s169, %s170
      %p184 = scmp.eq.s32.totalorder %s21, 1
      %p185 = por %p183, %p184
      %p187 = scmp.ne.s32.totalorder %s170, %s186
      %p188 = scmp.eq.s32.totalorder %s21, 0
      %p189 = por %p187, %p188
      %p190 = scmp.le.s32.totalorder 1, %s15
      %p191 = scmp.lt.s32.totalorder %s15, 3
      %p192 = pnand %p190, %p191
      %p193 = pneg %p192
      // Predicated region
      $region9: #{tpu_custom_call.1} parent=5 // pred_check
        _
      $region10: #{tpu_custom_call.1} parent=5 // pred_check_branch
        %195 = sbr.rel (%p192) target = $region12
      $region11: #{tpu_custom_call.1} parent=5 // pred_region
        %s196 = ssub.s32 %s15, 1
        // Predicated region
        $region13: #{tpu_custom_call.1} parent=11 // pred_check
          %p197 = pneg %p114
        $region14: #{tpu_custom_call.1} parent=11 // pred_check_branch
          %199 = sbr.rel (%p197) target = $region16
        $region15: #{tpu_custom_call.1} parent=11 // pred_region
          _
        $region16: #{tpu_custom_call.1} parent=11 // pred_fallthru
          _
        // Predicated region
        $region17: #{tpu_custom_call.1} parent=11 // pred_check
          %p200 = pneg %p135
        $region18: #{tpu_custom_call.1} parent=11 // pred_check_branch
          %202 = sbr.rel (%p200) target = $region20
        $region19: #{tpu_custom_call.1} parent=11 // pred_region
          _
        $region20: #{tpu_custom_call.1} parent=11 // pred_fallthru
          _
        // Predicated region
        $region21: #{tpu_custom_call.1} parent=11 // pred_check
          %p203 = pneg %p156
        $region22: #{tpu_custom_call.1} parent=11 // pred_check_branch
          %205 = sbr.rel (%p203) target = $region24
        $region23: #{tpu_custom_call.1} parent=11 // pred_region
          _
        $region24: #{tpu_custom_call.1} parent=11 // pred_fallthru
          _
      $region12: #{tpu_custom_call.1} parent=5 // pred_fallthru
        _
      %p206 = scmp.lt.s32.totalorder %s15, 2
      // Predicated region
      $region25: #{tpu_custom_call.1} parent=5 // pred_check
        %p207 = pneg %p206
      $region26: #{tpu_custom_call.1} parent=5 // pred_check_branch
        %209 = sbr.rel (%p207) target = $region28
      $region27: #{tpu_custom_call.1} parent=5 // pred_region
        // Predicated region
        $region29: #{tpu_custom_call.1} parent=27 // pred_check
          %p210 = pneg %p35
        $region30: #{tpu_custom_call.1} parent=27 // pred_check_branch
          %212 = sbr.rel (%p210) target = $region32
        $region31: #{tpu_custom_call.1} parent=27 // pred_region
          %p213 = scmp.lt.s32.totalorder %s15, 1
          %s214 = scalar_select %p213, %s15, 1
          %s215 = smul.addr %s214, 8
          %s216 = scalar_lea.vmem %s0, %s215
        $region32: #{tpu_custom_call.1} parent=27 // pred_fallthru
          _
        // Predicated region
        $region33: #{tpu_custom_call.1} parent=27 // pred_check
          %p217 = pneg %p61
        $region34: #{tpu_custom_call.1} parent=27 // pred_check_branch
          %219 = sbr.rel (%p217) target = $region36
        $region35: #{tpu_custom_call.1} parent=27 // pred_region
          %p220 = scmp.lt.s32.totalorder %s15, 1
          %s221 = scalar_select %p220, %s15, 1
          %s222 = smul.addr %s221, 8
          %s223 = scalar_lea.vmem %s1, %s222
        $region36: #{tpu_custom_call.1} parent=27 // pred_fallthru
          _
        // Predicated region
        $region37: #{tpu_custom_call.1} parent=27 // pred_check
          %p224 = pneg %p87
        $region38: #{tpu_custom_call.1} parent=27 // pred_check_branch
          %226 = sbr.rel (%p224) target = $region40
        $region39: #{tpu_custom_call.1} parent=27 // pred_region
          %p227 = scmp.lt.s32.totalorder %s15, 1
          %s228 = scalar_select %p227, %s15, 1
          %s229 = smul.addr %s228, 8
          %s230 = scalar_lea.vmem %s2, %s229
        $region40: #{tpu_custom_call.1} parent=27 // pred_fallthru
          _
      $region28: #{tpu_custom_call.1} parent=5 // pred_fallthru
        _
      %p231 = scmp.le.s32.totalorder 1, %s15
      %p232 = scmp.lt.s32.totalorder %s15, 3
      %p233 = pnand %p231, %p232
      %p234 = pneg %p233
      // Predicated region
      $region41: #{tpu_custom_call.1} parent=5 // pred_check
        _
      $region42: #{tpu_custom_call.1} parent=5 // pred_check_branch
        %236 = sbr.rel (%p233) target = $region44
      $region43: #{tpu_custom_call.1} parent=5 // pred_region
        %s237 = ssub.s32 %s15, 1
        %p238 = scmp.lt.s32.totalorder %s20, 1
        %s239 = scalar_select %p238, %s20, 1
        %s240 = smul.addr %s239, 8
        %s241 = scalar_lea.vmem %s0, %s240
        %p242 = pneg %p41
        %p243 = pneg %p38
        %p244 = scmp.lt.s32.totalorder %s20, 1
        %s245 = scalar_select %p244, %s20, 1
        %s246 = smul.addr %s245, 8
        %s247 = scalar_lea.vmem %s1, %s246
        %p248 = pneg %p67
        %p249 = pneg %p64
        %p250 = scmp.lt.s32.totalorder %s20, 1
        %s251 = scalar_select %p250, %s20, 1
        %s252 = smul.addr %s251, 8
        %s253 = scalar_lea.vmem %s2, %s252
        %p254 = pneg %p93
        %p255 = pneg %p90
        %p256 = pneg %p114
        %p257 = pneg %p111
        %p258 = pneg %p135
        %p259 = pneg %p132
        %p260 = pneg %p156
        %p261 = pneg %p153
        %p262 = pneg %p182
        %p263 = pneg %p179
        %s264 = sand.u32 %s169, 1
        %s265 = scalar_lea.sflag [#allocation3], %s264
        %s266 = sand.u32 %s169, 1
        %s267 = smul.addr %s266, 16
        %s268 = scalar_lea.vmem [#allocation2], %s267
        %p269 = scmp.lt.s32.totalorder %s20, 1
        %s270 = scalar_select %p269, %s20, 1
        %s271 = smul.addr %s270, 8
        %s272 = scalar_lea.vmem %s0, %s271
        %p273 = scmp.lt.s32.totalorder %s20, 1
        %s274 = scalar_select %p273, %s20, 1
        %s275 = smul.addr %s274, 8
        %s276 = scalar_lea.vmem %s1, %s275
        %p277 = scmp.lt.s32.totalorder %s20, 1
        %s278 = scalar_select %p277, %s20, 1
        %s279 = smul.addr %s278, 8
        %s280 = scalar_lea.vmem %s2, %s279
        %v281 = vld [vmem:[%s3] sm:$0xff]
        %v282 = vld [vmem:[%s3 + $0x8] sm:$0xff]
        %v283 = vld [vmem:[%s4] sm:$0xff]
        %v284 = vld [vmem:[%s4 + $0x8] sm:$0xff]
        %v285 = vld [vmem:[%s5] sm:$0xff]
        %v286 = vld [vmem:[%s5 + $0x8] sm:$0xff]
        %v287 = vlaneseq
        %v288 = vand.u32 %v287, 127
        %vm289 = vcmp.eq.s32.totalorder %v288, 0
        %vm290 = vcmp.eq.s32.totalorder %v288, 127
        %v291 = vld [vmem:[%s272] sm:$0xff]
        %v292 = vld [vmem:[%s276] sm:$0xff]
        %v293 = vld [vmem:[%s280] sm:$0xff]
        %294 = vadd.xlane.f32.xlu0 %v291
        %v295 = vpop.xlane.xlu0 %294
        %v296 = vrcp.pop 128.0
        %v297 = vmul.f32 %v295, %v296
        %v298 = vsub.f32 %v291, %v297
        %v299 = vmul.f32 %v298, %v298
        %300 = vadd.xlane.f32.xlu0 %v299
        %v301 = vpop.xlane.xlu0 %300
        %v302 = vrcp.pop 127.0
        %v303 = vmul.f32 %v301, %v302
        %v304 = vrsqrt.pop %v303
        %v305 = vmul.f32 %v303, %v304
        %vm306 = vcmp.eq.f32.partialorder %v303, inf
        %v307 = vsel %vm306, %v303, %v305
        %vm308 = vcmp.eq.f32.partialorder %v303, 0.0
        %v309 = vand.u32 %v303, 2147483648
        %v310 = vsel %vm308, %v309, %v307
        %v311 = vadd.f32 %v310, 1e-08
        %v312 = vrcp.pop %v311
        %v313 = vmul.f32 %v292, %v312
        %315 = vset.pattern.permute.xlu0 1
        %316 = vperm.xlu0 %315, %v313
        %v317 = vpop.permute.xlu0 %316
        %v319 = vmul.f32 %v317, %v298
        %321 = vset.pattern.permute.xlu0 0
        %322 = vperm.xlu0 %321, %v292
        %v323 = vpop.permute.xlu0 %322
        %v325 = vadd.f32 %v319, %v323
        %v326 = vmax.f32 %v325, 0.0
        %327 = vrot.lane.b32.xlu0 %v326, 1
        %v328 = vpop.permute.xlu0 %327
        %v329 = vsel %vm289, 1, 0
        %vm330 = vcmp.eq.s32.totalorder %v329, 1
        %v331 = vsel %vm330, 0.0, %v328
        %332 = vrot.lane.b32.xlu0 %v326, 127
        %v333 = vpop.permute.xlu0 %332
        %v334 = vsel %vm290, 1, 0
        %vm335 = vcmp.eq.s32.totalorder %v334, 1
        %v336 = vsel %vm335, 0.0, %v333
        %338 = vset.pattern.permute.xlu0 0
        %339 = vperm.xlu0 %338, %v285
        %v340 = vpop.permute.xlu0 %339
        %343 = vset.pattern.permute.xlu0 0
        %344 = vperm.xlu0 %343, %v286
        %v345 = vpop.permute.xlu0 %344
        %vm347 = vcmask 195584
        %v349 = vsel %vm347, %v281, 0
        %v352 = vsel %vm347, %v282, 0
        %354 = vmatprep.subr.mxu0 0.0
        %355 = vmatpush1.msra.mxu0 %v331
        %356 = vmatprep.subr.mxu0 0.0
        %357 = vmatpush1.msra.mxu0 %v326
        %358 = vmatprep.subr.mxu0 0.0
        %359 = vmatpush1.msra.mxu0 %v336
        %360 = vmatprep.subr.mxu0 0.0
        %361 = vmatpush1.msra.mxu0 0.0
        %362 = vmatprep.subr.mxu0 0.0
        %363 = vmatpush1.msra.mxu0 0.0
        %364 = vmatprep.subr.mxu0 0.0
        %365 = vmatpush1.msra.mxu0 0.0
        %366 = vmatprep.subr.mxu0 0.0
        %367 = vmatpush1.msra.mxu0 0.0
        %368 = vmatprep.subr.mxu0 0.0
        %369 = vmatpush1.msra.mxu0 0.0
        %370 = vmatprep.subr.mxu0 0.0
        %371 = vmatpush1.msra.mxu0 0.0
        %372 = vmatprep.subr.mxu0 0.0
        %373 = vmatpush1.msra.mxu0 0.0
        %374 = vmatprep.subr.mxu0 0.0
        %375 = vmatpush1.msra.mxu0 0.0
        %376 = vmatprep.subr.mxu0 0.0
        %377 = vmatpush1.msra.mxu0 0.0
        %378 = vmatprep.subr.mxu0 0.0
        %379 = vmatpush1.msra.mxu0 0.0
        %380 = vmatprep.subr.mxu0 0.0
        %381 = vmatpush1.msra.mxu0 0.0
        %382 = vmatprep.subr.mxu0 0.0
        %383 = vmatpush1.msra.mxu0 0.0
        %384 = vmatprep.subr.mxu0 0.0
        %385 = vmatpush1.msra.mxu0 0.0
        %386 = vmatprep.subr.mxu0 0.0
        %387 = vmatpush1.msra.mxu0 0.0
        %388 = vmatprep.subr.mxu0 0.0
        %389 = vmatpush1.msra.mxu0 0.0
        %390 = vmatprep.subr.mxu0 0.0
        %391 = vmatpush1.msra.mxu0 0.0
        %392 = vmatprep.subr.mxu0 0.0
        %393 = vmatpush1.msra.mxu0 0.0
        %394 = vmatprep.subr.mxu0 0.0
        %395 = vmatpush1.msra.mxu0 0.0
        %396 = vmatprep.subr.mxu0 0.0
        %397 = vmatpush1.msra.mxu0 0.0
        %398 = vmatprep.subr.mxu0 0.0
        %399 = vmatpush1.msra.mxu0 0.0
        %400 = vmatprep.subr.mxu0 0.0
        %401 = vmatpush1.msra.mxu0 0.0
        %402 = vmatprep.subr.mxu0 0.0
        %403 = vmatpush1.msra.mxu0 0.0
        %404 = vmatprep.subr.mxu0 0.0
        %405 = vmatpush1.msra.mxu0 0.0
        %406 = vmatprep.subr.mxu0 0.0
        %407 = vmatpush1.msra.mxu0 0.0
        %408 = vmatprep.subr.mxu0 0.0
        %409 = vmatpush1.msra.mxu0 0.0
        %410 = vmatprep.subr.mxu0 0.0
        %411 = vmatpush1.msra.mxu0 0.0
        %412 = vmatprep.subr.mxu0 0.0
        %413 = vmatpush1.msra.mxu0 0.0
        %414 = vmatprep.subr.mxu0 0.0
        %415 = vmatpush1.msra.mxu0 0.0
        %416 = vmatprep.subr.mxu0 0.0
        %417 = vmatpush1.msra.mxu0 0.0
        %418 = vmatprep.mubr.f32.mxu0 0.0
        %419 = vmatmul.mubr.f32.gmra.mrb[0].mxu0 %v349
        %v420 = vpop.f32.mrb[0].mxu0
        %v421 = vadd.f32 %v340, %v420
        %v422 = vpop.f32.mrb[0].mxu0
        %423 = vmatprep.mubr.f32.mxu0 0.0
        %424 = vmatmul.mubr.f32.gmra.mrb[0].mxu0 %v352
        %v425 = vpop.f32.mrb[0].mxu0
        %v426 = vadd.f32 %v345, %v425
        %v427 = vpop.f32.mrb[0].mxu0
        %428 = vdwg.mxu0
        %429 = vadd.xlane.f32.xlu0 %v421
        %v430 = vpop.xlane.xlu0 %429
        %431 = vadd.xlane.f32.xlu0 %v426
        %v432 = vpop.xlane.xlu0 %431
        %v433 = vadd.f32 %v430, %v432
        %v434 = vrcp.pop 256.0
        %v435 = vmul.f32 %v433, %v434
        %v436 = vsub.f32 %v421, %v435
        %v437 = vsub.f32 %v426, %v435
        %v438 = vmul.f32 %v436, %v436
        %439 = vadd.xlane.f32.xlu0 %v438
        %v440 = vpop.xlane.xlu0 %439
        %v441 = vmul.f32 %v437, %v437
        %442 = vadd.xlane.f32.xlu0 %v441
        %v443 = vpop.xlane.xlu0 %442
        %v444 = vadd.f32 %v440, %v443
        %v445 = vrcp.pop 255.0
        %v446 = vmul.f32 %v444, %v445
        %v447 = vrsqrt.pop %v446
        %v448 = vmul.f32 %v446, %v447
        %vm449 = vcmp.eq.f32.partialorder %v446, inf
        %v450 = vsel %vm449, %v446, %v448
        %vm451 = vcmp.eq.f32.partialorder %v446, 0.0
        %v452 = vand.u32 %v446, 2147483648
        %v453 = vsel %vm451, %v452, %v450
        %v454 = vadd.f32 %v453, 1e-08
        %v455 = vrcp.pop %v454
        %v456 = vmul.f32 %v293, %v455
        %458 = vset.pattern.permute.xlu0 1
        %459 = vperm.xlu0 %458, %v456
        %v460 = vpop.permute.xlu0 %459
        %v462 = vmul.f32 %v460, %v436
        %464 = vset.pattern.permute.xlu0 0
        %465 = vperm.xlu0 %464, %v293
        %v466 = vpop.permute.xlu0 %465
        %v468 = vadd.f32 %v462, %v466
        %v469 = vmul.f32 %v460, %v437
        %v470 = vadd.f32 %v469, %v466
        %471 = vrot.lane.b32.xlu0 %v470, 1
        %v472 = vpop.permute.xlu0 %471
        %v473 = vsel %vm330, 0.0, %v472
        %474 = vrot.lane.b32.xlu0 %v468, 127
        %v475 = vpop.permute.xlu0 %474
        %v476 = vsel %vm335, 0.0, %v475
        %477 = vset.pattern.permute.xlu0 1
        %478 = vperm.xlu0 %477, %v285
        %v479 = vpop.permute.xlu0 %478
        %481 = vset.pattern.permute.xlu0 1
        %482 = vperm.xlu0 %481, %v286
        %v483 = vpop.permute.xlu0 %482
        %vm485 = vcmask 326656
        %v487 = vsel %vm485, %v283, 0
        %v490 = vsel %vm485, %v284, 0
        %492 = vmatprep.subr.mxu0 0.0
        %493 = vmatpush1.msra.mxu0 %v473
        %494 = vmatprep.subr.mxu0 0.0
        %495 = vmatpush1.msra.mxu0 %v468
        %496 = vmatprep.subr.mxu0 0.0
        %497 = vmatpush1.msra.mxu0 %v470
        %498 = vmatprep.subr.mxu0 0.0
        %499 = vmatpush1.msra.mxu0 %v476
        %500 = vmatprep.subr.mxu0 0.0
        %501 = vmatpush1.msra.mxu0 %v291
        %502 = vmatprep.subr.mxu0 0.0
        %503 = vmatpush1.msra.mxu0 0.0
        %504 = vmatprep.subr.mxu0 0.0
        %505 = vmatpush1.msra.mxu0 0.0
        %506 = vmatprep.subr.mxu0 0.0
        %507 = vmatpush1.msra.mxu0 0.0
        %508 = vmatprep.subr.mxu0 0.0
        %509 = vmatpush1.msra.mxu0 0.0
        %510 = vmatprep.subr.mxu0 0.0
        %511 = vmatpush1.msra.mxu0 0.0
        %512 = vmatprep.subr.mxu0 0.0
        %513 = vmatpush1.msra.mxu0 0.0
        %514 = vmatprep.subr.mxu0 0.0
        %515 = vmatpush1.msra.mxu0 0.0
        %516 = vmatprep.subr.mxu0 0.0
        %517 = vmatpush1.msra.mxu0 0.0
        %518 = vmatprep.subr.mxu0 0.0
        %519 = vmatpush1.msra.mxu0 0.0
        %520 = vmatprep.subr.mxu0 0.0
        %521 = vmatpush1.msra.mxu0 0.0
        %522 = vmatprep.subr.mxu0 0.0
        %523 = vmatpush1.msra.mxu0 0.0
        %524 = vmatprep.subr.mxu0 0.0
        %525 = vmatpush1.msra.mxu0 0.0
        %526 = vmatprep.subr.mxu0 0.0
        %527 = vmatpush1.msra.mxu0 0.0
        %528 = vmatprep.subr.mxu0 0.0
        %529 = vmatpush1.msra.mxu0 0.0
        %530 = vmatprep.subr.mxu0 0.0
        %531 = vmatpush1.msra.mxu0 0.0
        %532 = vmatprep.subr.mxu0 0.0
        %533 = vmatpush1.msra.mxu0 0.0
        %534 = vmatprep.subr.mxu0 0.0
        %535 = vmatpush1.msra.mxu0 0.0
        %536 = vmatprep.subr.mxu0 0.0
        %537 = vmatpush1.msra.mxu0 0.0
        %538 = vmatprep.subr.mxu0 0.0
        %539 = vmatpush1.msra.mxu0 0.0
        %540 = vmatprep.subr.mxu0 0.0
        %541 = vmatpush1.msra.mxu0 0.0
        %542 = vmatprep.subr.mxu0 0.0
        %543 = vmatpush1.msra.mxu0 0.0
        %544 = vmatprep.subr.mxu0 0.0
        %545 = vmatpush1.msra.mxu0 0.0
        %546 = vmatprep.subr.mxu0 0.0
        %547 = vmatpush1.msra.mxu0 0.0
        %548 = vmatprep.subr.mxu0 0.0
        %549 = vmatpush1.msra.mxu0 0.0
        %550 = vmatprep.subr.mxu0 0.0
        %551 = vmatpush1.msra.mxu0 0.0
        %552 = vmatprep.subr.mxu0 0.0
        %553 = vmatpush1.msra.mxu0 0.0
        %554 = vmatprep.subr.mxu0 0.0
        %555 = vmatpush1.msra.mxu0 0.0
        %556 = vmatprep.mubr.f32.mxu0 0.0
        %557 = vmatmul.mubr.f32.gmra.mrb[0].mxu0 %v487
        %v558 = vpop.f32.mrb[0].mxu0
        %v559 = vadd.f32 %v479, %v558
        %v560 = vpop.f32.mrb[0].mxu0
        %561 = vmatprep.mubr.f32.mxu0 0.0
        %562 = vmatmul.mubr.f32.gmra.mrb[0].mxu0 %v490
        %v563 = vpop.f32.mrb[0].mxu0
        %v564 = vadd.f32 %v483, %v563
        %v565 = vpop.f32.mrb[0].mxu0
        %566 = vdwg.mxu0
        %567 = vst [vmem:[%s268] sm:$0xff] %v559
        %568 = vst [vmem:[%s268 + $0x8] sm:$0xff] %v564
        %s569 = sand.u32 %s169, 1
        %s570 = scalar_lea.sflag [#allocation3], %s569
        %s571 = sand.u32 %s169, 1
        %s572 = smul.addr %s571, 16
        %s573 = scalar_lea.vmem [#allocation2], %s572
        // Predicated region
        $region45: #{tpu_custom_call.1} parent=43 // pred_check
          %p574 = pneg %p179
        $region46: #{tpu_custom_call.1} parent=43 // pred_check_branch
          %576 = sbr.rel (%p574) target = $region48
        $region47: #{tpu_custom_call.1} parent=43 // pred_region
          %s578 = ssub.s32 256, 256
          %579 = vsyncadd %s570, %s578
          %s580 = smul.addr %s20, 2
          %s581 = smul.addr %s580, 128
          %s582 = scalar_lea.hbm %s6, %s581
          %s583 = sshll.u32 %s573, 4
          %s584 = int_to_ptr.vmem [resolvable:$true] %s583
          %589 = dma.vmem_to_hbm [thread:$0]  %s584, 256, %s582, %s570, 128, 128, 8
        $region48: #{tpu_custom_call.1} parent=43 // pred_fallthru
          _
      $region44: #{tpu_custom_call.1} parent=5 // pred_fallthru
        _
      %p590 = scmp.le.s32.totalorder 2, %s15
      // Predicated region
      $region49: #{tpu_custom_call.1} parent=5 // pred_check
        %p591 = pneg %p590
      $region50: #{tpu_custom_call.1} parent=5 // pred_check_branch
        %593 = sbr.rel (%p591) target = $region52
      $region51: #{tpu_custom_call.1} parent=5 // pred_region
        %s594 = ssub.s32 %s15, 2
        // Predicated region
        $region53: #{tpu_custom_call.1} parent=51 // pred_check
          %p595 = pneg %p185
        $region54: #{tpu_custom_call.1} parent=51 // pred_check_branch
          %597 = sbr.rel (%p595) target = $region56
        $region55: #{tpu_custom_call.1} parent=51 // pred_region
          %s598 = sand.u32 %s170, 1
          %s599 = scalar_lea.sflag [#allocation3], %s598
          %s600 = sand.u32 %s170, 1
          %s601 = smul.addr %s600, 16
          %s602 = scalar_lea.vmem [#allocation2], %s601
          %603 = dma.done %s599, 256
        $region56: #{tpu_custom_call.1} parent=51 // pred_fallthru
          _
      $region52: #{tpu_custom_call.1} parent=5 // pred_fallthru
        _
    $region6: #{tpu_custom_call.1} parent=1 // loop_footer
      %s19 = sadd.s32 1, %s15
    $region7: #{tpu_custom_call.1} parent=1 // loop_footer_branch
      %14 = sbr.rel target = $region3
    $region8: #{tpu_custom_call.1} parent=1 // loop_exit
      _
    %604 = vsyncpa [#allocation3], 1
    %s605 = scalar_lea.sflag [#allocation3], 1
    %606 = vsyncpa %s605, 1

</llo_original>
